<compile_context>
chip_gen: v5e
topology: v5e:2x2
jax: 0.10.0
libtpu: 0.0.40
codegen_flags: <defaults>
</compile_context>

<pallas_src>
import jax
import jax.numpy as jnp
from jax.experimental import pallas as pl
from jax.experimental.pallas import tpu as pltpu

EMB_DIM = 8
NUM_QUERY, NUM_DOC, NUM_UTDID = 1000, 500, 10000
FEAT = 3 * EMB_DIM + 3          # 27, matches nn.Linear(8 + 8 + 8 + 3, hidden)
FEAT_PAD = 32                   # padded feature rows (row 27 = ones for b1 fold, 28..31 zero)
HIDDEN = 64                     # hidden_dim default in the PyTorch module
FUSED_H = 2 * HIDDEN            # 128: both towers' hidden layers stacked (ctr rows 0:64, cvr 64:128)
OUT_ROWS = 8                    # one sublane group; rows 0/1 hold ctr/cvr, rest padding

LANE = 128
MAX_TILE_ROWS = 2048            # batch-tile cap (lane dim of x_t / out)


def _cdiv(a, b):
    return -(-a // b)


def _round_up(n, m):
    return _cdiv(n, m) * m


def _pick_batch_tiling(B):
    """Lane-aligned batch tile; >=2 grid steps when there is enough work (v7x megacore)."""
    b = _round_up(max(B, 1), LANE)
    groups = b // LANE
    n_tiles = max(_cdiv(groups, MAX_TILE_ROWS // LANE), 2 if groups >= 2 else 1)
    tb = _cdiv(groups, n_tiles) * LANE
    b_pad = _round_up(b, tb)
    return tb, b_pad


def esmm_fused_kernel(x_ref, w1_ref, w2_ref, b2_ref, out_ref):
    """Both towers, fused, computed transposed (batch on the lane axis).

    x_ref:  (32, TB)    padded features; row 27 is all-ones (b1 fold), rows 28..31 zero
    w1_ref: (128, 32)   [W1_ctr; W1_cvr]^T with b1 folded into column 27
    w2_ref: (8, 128)    row 0 = w2_ctr^T on cols 0:64, row 1 = w2_cvr^T on cols 64:128
    b2_ref: (8, 1)      rows 0/1 = b2_ctr/b2_cvr
    out_ref:(8, TB)     sigmoid(z); rows 0/1 = ctr/cvr, rows 2..7 = sigmoid(0) padding
    """
    h = jnp.dot(w1_ref[...], x_ref[...], preferred_element_type=jnp.float32)   # (128, TB)
    h = jnp.maximum(h, 0.0)
    z = jnp.dot(w2_ref[...], h, preferred_element_type=jnp.float32) + b2_ref[...]  # (8, TB)
    out_ref[...] = jax.nn.sigmoid(z)


def _pack_fused_weights(params):
    """Pack per-tower weights into the transposed fused forms used by the kernel."""
    # W1^T fused: (128, 32). Rows 0:64 = w1_ctr^T, rows 64:128 = w1_cvr^T.
    # Column FEAT (=27) carries [b1_ctr; b1_cvr] — bias fold against the ones-row of x.
    w1t = jnp.zeros((FUSED_H, FEAT_PAD), jnp.float32)
    w1t = w1t.at[:HIDDEN, :FEAT].set(params["w1_ctr"].T)
    w1t = w1t.at[HIDDEN:, :FEAT].set(params["w1_cvr"].T)
    w1t = w1t.at[:HIDDEN, FEAT].set(params["b1_ctr"][0])
    w1t = w1t.at[HIDDEN:, FEAT].set(params["b1_cvr"][0])

    # W2^T: (8, 128). Row 0 = ctr head over the ctr half of h, row 1 = cvr head.
    w2t = jnp.zeros((OUT_ROWS, FUSED_H), jnp.float32)
    w2t = w2t.at[0, :HIDDEN].set(params["w2_ctr"][:, 0])
    w2t = w2t.at[1, HIDDEN:].set(params["w2_cvr"][:, 0])

    b2 = jnp.zeros((OUT_ROWS, 1), jnp.float32)
    b2 = b2.at[0, 0].set(params["b2_ctr"][0, 0])
    b2 = b2.at[1, 0].set(params["b2_cvr"][0, 0])
    return w1t, w2t, b2


@jax.jit
def esmm_forward(params, query_id, doc_id, utdid, position, device_type, doc_length):
    """Embedding lookups + concat in JAX; fused two-tower MLP in one Pallas kernel."""
    q_emb = jnp.take(params["query_emb"], query_id, axis=0)                  # (B, 8)
    d_emb = jnp.take(params["doc_emb"], doc_id, axis=0)                      # (B, 8)
    u_emb = jnp.take(params["utdid_emb"], utdid, axis=0)                     # (B, 8)

    B = query_id.shape[0]
    TB, B_pad = _pick_batch_tiling(B)

    # Transposed feature slab (features on sublanes, batch on lanes). The pad rows and
    # the bias-fold ones-row are emitted directly by the concat — no separate slab pass.
    x_t = jnp.concatenate(
        [
            q_emb.T, d_emb.T, u_emb.T,
            position[None, :].astype(jnp.float32),
            device_type[None, :].astype(jnp.float32),
            doc_length[None, :].astype(jnp.float32),
            jnp.ones((1, B), jnp.float32),                        # row 27: b1 fold
            jnp.zeros((FEAT_PAD - FEAT - 1, B), jnp.float32),     # rows 28..31
        ],
        axis=0,
    )                                                             # (32, B)
    if B_pad > B:
        x_t = jnp.pad(x_t, ((0, 0), (0, B_pad - B)))              # (32, B_pad)

    w1t, w2t, b2 = _pack_fused_weights(params)

    grid = (B_pad // TB,)
    flops = 2 * B_pad * (FUSED_H * FEAT_PAD + OUT_ROWS * FUSED_H)
    bytes_accessed = 4 * (FEAT_PAD * B_pad + FUSED_H * FEAT_PAD
                          + OUT_ROWS * FUSED_H + OUT_ROWS + OUT_ROWS * B_pad)

    out = pl.pallas_call(
        esmm_fused_kernel,
        out_shape=jax.ShapeDtypeStruct((OUT_ROWS, B_pad), jnp.float32),
        grid_spec=pltpu.PrefetchScalarGridSpec(
            num_scalar_prefetch=0,
            grid=grid,
            in_specs=[
                pl.BlockSpec((FEAT_PAD, TB), lambda i: (0, i)),      # x tile, pipelined
                pl.BlockSpec((FUSED_H, FEAT_PAD), lambda i: (0, 0)),  # W1^T resident
                pl.BlockSpec((OUT_ROWS, FUSED_H), lambda i: (0, 0)),  # W2^T resident
                pl.BlockSpec((OUT_ROWS, 1), lambda i: (0, 0)),        # b2 resident
            ],
            out_specs=pl.BlockSpec((OUT_ROWS, TB), lambda i: (0, i)),
        ),
        compiler_params=pltpu.CompilerParams(
            dimension_semantics=("parallel",),   # lets v7x shard batch tiles across 2 TCs
        ),
        cost_estimate=pl.CostEstimate(
            flops=flops,
            transcendentals=OUT_ROWS * B_pad,    # sigmoid over 8 rows, not 128
            bytes_accessed=bytes_accessed,
        ),
    )(x_t, w1t, w2t, b2)

    ctr = out[0, :B][:, None]
    cvr = out[1, :B][:, None]
    return ctr, cvr


def init_params(key):
    ks = jax.random.split(key, 11)

    def lin(kw, fan_in, fan_out):
        bound = 1.0 / jnp.sqrt(jnp.float32(fan_in))
        return jax.random.uniform(kw, (fan_in, fan_out), jnp.float32, -bound, bound)

    return {
        "query_emb": jax.random.normal(ks[0], (NUM_QUERY, EMB_DIM), jnp.float32),
        "doc_emb":   jax.random.normal(ks[1], (NUM_DOC, EMB_DIM), jnp.float32),
        "utdid_emb": jax.random.normal(ks[2], (NUM_UTDID, EMB_DIM), jnp.float32),
        "w1_ctr": lin(ks[3], FEAT, HIDDEN),
        "b1_ctr": jax.random.uniform(ks[4], (1, HIDDEN), jnp.float32, -0.1, 0.1),
        "w2_ctr": lin(ks[5], HIDDEN, 1),
        "b2_ctr": jax.random.uniform(ks[6], (1, 1), jnp.float32, -0.1, 0.1),
        "w1_cvr": lin(ks[7], FEAT, HIDDEN),
        "b1_cvr": jax.random.uniform(ks[8], (1, HIDDEN), jnp.float32, -0.1, 0.1),
        "w2_cvr": lin(ks[9], HIDDEN, 1),
        "b2_cvr": jax.random.uniform(ks[10], (1, 1), jnp.float32, -0.1, 0.1),
    }


if __name__ == "__main__":
    key = jax.random.PRNGKey(0)
    pk, dk = jax.random.split(key)
    params = init_params(pk)

    B = 16
    dks = jax.random.split(dk, 6)
    query_id    = jax.random.randint(dks[0], (B,), 0, NUM_QUERY)
    doc_id      = jax.random.randint(dks[1], (B,), 0, NUM_DOC)
    utdid       = jax.random.randint(dks[2], (B,), 0, NUM_UTDID)
    position    = jax.random.randint(dks[3], (B,), 0, 20).astype(jnp.float32)
    device_type = jax.random.randint(dks[4], (B,), 0, 3).astype(jnp.float32)
    doc_length  = jax.random.randint(dks[5], (B,), 1, 500).astype(jnp.float32)

    ctr, cvr = esmm_forward(params, query_id, doc_id, utdid,
                            position, device_type, doc_length)
    jax.block_until_ready((ctr, cvr))

    # Reference check against plain JAX (unfused, original formulation).
    def ref():
        q = jnp.take(params["query_emb"], query_id, axis=0)
        d = jnp.take(params["doc_emb"], doc_id, axis=0)
        u = jnp.take(params["utdid_emb"], utdid, axis=0)
        x = jnp.concatenate([q, d, u, position[:, None], device_type[:, None],
                             doc_length[:, None]], axis=1)
        h1 = jnp.maximum(x @ params["w1_ctr"] + params["b1_ctr"], 0.0)
        r_ctr = jax.nn.sigmoid(h1 @ params["w2_ctr"] + params["b2_ctr"])
        h2 = jnp.maximum(x @ params["w1_cvr"] + params["b1_cvr"], 0.0)
        r_cvr = jax.nn.sigmoid(h2 @ params["w2_cvr"] + params["b2_cvr"])
        return r_ctr, r_cvr

    r_ctr, r_cvr = ref()
    assert ctr.shape == (B, 1) and cvr.shape == (B, 1)
    assert jnp.allclose(ctr, r_ctr, atol=1e-5), "ctr mismatch"
    assert jnp.allclose(cvr, r_cvr, atol=1e-5), "cvr mismatch"
    print("KERNEL_OK")
</pallas_src>

<mosaic_0001>
module attributes {stable_mosaic.version = 11 : i64} {
  func.func @esmm_fused_kernel(%arg0: i32, %arg1: memref<32x128xf32, #tpu.memory_space<vmem>>, %arg2: memref<128x32xf32, #tpu.memory_space<vmem>>, %arg3: memref<8x128xf32, #tpu.memory_space<vmem>>, %arg4: memref<8x1xf32, #tpu.memory_space<vmem>>, %arg5: memref<8x128xf32, #tpu.memory_space<vmem>>) attributes {dimension_semantics = [#tpu.dimension_semantics<parallel>], iteration_bounds = array<i64: 1>, scalar_prefetch = 0 : i64, scratch_operands = 0 : i64, tpu.core_type = #tpu.core_type<tc>, window_params = [{transform_indices = @transform_0, window_bounds = array<i64: 32, 128>}, {pipeline_mode = #tpu.pipeline_mode<synchronous>, transform_indices = @transform_1, window_bounds = array<i64: 128, 32>}, {pipeline_mode = #tpu.pipeline_mode<synchronous>, transform_indices = @transform_2, window_bounds = array<i64: 8, 128>}, {pipeline_mode = #tpu.pipeline_mode<synchronous>, transform_indices = @transform_3, window_bounds = array<i64: 8, 1>}, {transform_indices = @transform_4, window_bounds = array<i64: 8, 128>}]} {
    %c0 = arith.constant 0 : index
    %c0_0 = arith.constant 0 : index
    %0 = vector.load %arg2[%c0, %c0_0] : memref<128x32xf32, #tpu.memory_space<vmem>>, vector<128x32xf32>
    %c0_1 = arith.constant 0 : index
    %c0_2 = arith.constant 0 : index
    %1 = vector.load %arg1[%c0_1, %c0_2] : memref<32x128xf32, #tpu.memory_space<vmem>>, vector<32x128xf32>
    %cst = arith.constant dense<0.000000e+00> : vector<128x128xf32>
    %2 = tpu.matmul %0, %1, %cst {dimension_numbers = #tpu.dot_dimension_numbers<[1], [0], [0], [1], [0, 0, 1, 1], [], []>} : vector<128x32xf32>, vector<32x128xf32>, vector<128x128xf32> -> vector<128x128xf32>
    %cst_3 = arith.constant 0.000000e+00 : f32
    %3 = vector.broadcast %cst_3 : f32 to vector<128x128xf32>
    %4 = arith.maximumf %2, %3 : vector<128x128xf32>
    %c0_4 = arith.constant 0 : index
    %c0_5 = arith.constant 0 : index
    %5 = vector.load %arg3[%c0_4, %c0_5] : memref<8x128xf32, #tpu.memory_space<vmem>>, vector<8x128xf32>
    %cst_6 = arith.constant dense<0.000000e+00> : vector<8x128xf32>
    %6 = tpu.matmul %5, %4, %cst_6 {dimension_numbers = #tpu.dot_dimension_numbers<[1], [0], [0], [1], [0, 0, 1, 1], [], []>} : vector<8x128xf32>, vector<128x128xf32>, vector<8x128xf32> -> vector<8x128xf32>
    %c0_7 = arith.constant 0 : index
    %c0_8 = arith.constant 0 : index
    %7 = vector.load %arg4[%c0_7, %c0_8] : memref<8x1xf32, #tpu.memory_space<vmem>>, vector<8x1xf32>
    %8 = vector.broadcast %7 : vector<8x1xf32> to vector<8x128xf32>
    %9 = arith.addf %6, %8 : vector<8x128xf32>
    %10 = arith.negf %9 : vector<8x128xf32>
    %11 = math.exp %10 : vector<8x128xf32>
    %cst_9 = arith.constant 1.000000e+00 : f32
    %12 = vector.broadcast %cst_9 : f32 to vector<8x128xf32>
    %13 = arith.addf %12, %11 : vector<8x128xf32>
    %14 = arith.divf %12, %13 : vector<8x128xf32>
    %c0_10 = arith.constant 0 : index
    %c0_11 = arith.constant 0 : index
    %15 = vector.load %arg5[%c0_10, %c0_11] : memref<8x128xf32, #tpu.memory_space<vmem>>, vector<8x128xf32>
    tpu.vector_store %arg5[%c0_10, %c0_11], %14 {strides = array<i32>} : memref<8x128xf32, #tpu.memory_space<vmem>>, vector<8x128xf32>,
    return
  }
  func.func @transform_0(%arg0: i32) -> (i32, i32) {
    %c0_i32 = arith.constant 0 : i32
    %c0_i32_0 = arith.constant 0 : i32
    return %c0_i32, %arg0 : i32, i32
  }
  func.func @transform_1(%arg0: i32) -> (i32, i32) {
    %c0_i32 = arith.constant 0 : i32
    %c0_i32_0 = arith.constant 0 : i32
    %c0_i32_1 = arith.constant 0 : i32
    return %c0_i32, %c0_i32_0 : i32, i32
  }
  func.func @transform_2(%arg0: i32) -> (i32, i32) {
    %c0_i32 = arith.constant 0 : i32
    %c0_i32_0 = arith.constant 0 : i32
    %c0_i32_1 = arith.constant 0 : i32
    return %c0_i32, %c0_i32_0 : i32, i32
  }
  func.func @transform_3(%arg0: i32) -> (i32, i32) {
    %c0_i32 = arith.constant 0 : i32
    %c0_i32_0 = arith.constant 0 : i32
    %c0_i32_1 = arith.constant 0 : i32
    return %c0_i32, %c0_i32_0 : i32, i32
  }
  func.func @transform_4(%arg0: i32) -> (i32, i32) {
    %c0_i32 = arith.constant 0 : i32
    %c0_i32_0 = arith.constant 0 : i32
    return %c0_i32, %arg0 : i32, i32
  }
}

</mosaic_0001>

<llo_original>
// kernel: esmm_forward.1
$region0: #{esmm_forward.1}
  #allocation0 [shape = 'u32[]', space=smem, size = 0x4, offset = 0x4, fixed_abs, tag = 'smem constant byte address 0x4 - core index']
  #allocation1 [shape = 'u32[72,128]{1,0:T(1,128)}', space=vmem, size = 0x9000, scoped, tag = 'internal scratch']
  %s0 = inlined_call_operand.vmem [shape: f32[32,128], index: 0, kind: input, shape index: {}]
  %s1 = inlined_call_operand.vmem [shape: f32[128,32], index: 1, kind: input, shape index: {}]
  %s2 = inlined_call_operand.vmem [shape: f32[8,128], index: 2, kind: input, shape index: {}]
  %s3 = inlined_call_operand.vmem [shape: f32[8,1], index: 3, kind: input, shape index: {}]
  %s4 = inlined_call_operand.vmem [shape: f32[8,128], index: 4, kind: output, shape index: {}]
  %s5 = sld [smem:[#allocation0]]
  $region26: #{esmm_forward.1} parent=0
    _
  %s7 = ssub.s32 1, %s5
  %s8 = scalar_select 0, %s7, %s5
  // Predicated region
  $region2: #{esmm_forward.1} parent=0 // pred_check
    _
  $region3: #{esmm_forward.1} parent=0 // pred_check_branch
    %10 = sbr.rel (0) target = $region5
  $region4: #{esmm_forward.1} parent=0 // pred_region
    _
  $region5: #{esmm_forward.1} parent=0 // pred_fallthru
    _
  // Predicated region
  $region6: #{esmm_forward.1} parent=0 // pred_check
    _
  $region7: #{esmm_forward.1} parent=0 // pred_check_branch
    %12 = sbr.rel (0) target = $region9
  $region8: #{esmm_forward.1} parent=0 // pred_region
    _
  $region9: #{esmm_forward.1} parent=0 // pred_fallthru
    _
  // Predicated region
  $region10: #{esmm_forward.1} parent=0 // pred_check
    _
  $region11: #{esmm_forward.1} parent=0 // pred_check_branch
    %14 = sbr.rel (0) target = $region13
  $region12: #{esmm_forward.1} parent=0 // pred_region
    _
  $region13: #{esmm_forward.1} parent=0 // pred_fallthru
    _
  // Predicated region
  $region14: #{esmm_forward.1} parent=0 // pred_check
    _
  $region15: #{esmm_forward.1} parent=0 // pred_check_branch
    %16 = sbr.rel (0) target = $region17
  $region16: #{esmm_forward.1} parent=0 // pred_region
    _
  $region17: #{esmm_forward.1} parent=0 // pred_fallthru
    _
  %v17 = vld [vmem:[%s1] sm:$0xff]
  %v18 = vld [vmem:[%s1 + $0x8] sm:$0xff]
  %v19 = vld [vmem:[%s1 + $0x10] sm:$0xff]
  %v20 = vld [vmem:[%s1 + $0x18] sm:$0xff]
  %v21 = vld [vmem:[%s1 + $0x20] sm:$0xff]
  %v22 = vld [vmem:[%s1 + $0x28] sm:$0xff]
  %v23 = vld [vmem:[%s1 + $0x30] sm:$0xff]
  %v24 = vld [vmem:[%s1 + $0x38] sm:$0xff]
  %v25 = vld [vmem:[%s1 + $0x40] sm:$0xff]
  %v26 = vld [vmem:[%s1 + $0x48] sm:$0xff]
  %v27 = vld [vmem:[%s1 + $0x50] sm:$0xff]
  %v28 = vld [vmem:[%s1 + $0x58] sm:$0xff]
  %v29 = vld [vmem:[%s1 + $0x60] sm:$0xff]
  %v30 = vld [vmem:[%s1 + $0x68] sm:$0xff]
  %v31 = vld [vmem:[%s1 + $0x70] sm:$0xff]
  %v32 = vld [vmem:[%s1 + $0x78] sm:$0xff]
  %v33 = vld [vmem:[%s0] sm:$0xff]
  %v34 = vld [vmem:[%s0 + $0x8] sm:$0xff]
  %v35 = vld [vmem:[%s0 + $0x10] sm:$0xff]
  %v36 = vld [vmem:[%s0 + $0x18] sm:$0xff]
  %vm37 = vcmask 261120
  %v39 = vsel %vm37, %v17, 0
  %v42 = vsel %vm37, %v18, 0
  %v45 = vsel %vm37, %v19, 0
  %v48 = vsel %vm37, %v20, 0
  %v51 = vsel %vm37, %v21, 0
  %v54 = vsel %vm37, %v22, 0
  %v57 = vsel %vm37, %v23, 0
  %v60 = vsel %vm37, %v24, 0
  %v63 = vsel %vm37, %v25, 0
  %v66 = vsel %vm37, %v26, 0
  %v69 = vsel %vm37, %v27, 0
  %v72 = vsel %vm37, %v28, 0
  %v75 = vsel %vm37, %v29, 0
  %v78 = vsel %vm37, %v30, 0
  %v81 = vsel %vm37, %v31, 0
  %v84 = vsel %vm37, %v32, 0
  %86 = vmatpush.msra.mxu0 0.0
  %87 = vmatpush.msra.mxu0 0.0
  %88 = vmatpush.msra.mxu0 0.0
  %89 = vmatpush.msra.mxu0 0.0
  %90 = vmatpush.msra.mxu0 0.0
  %91 = vmatpush.msra.mxu0 0.0
  %92 = vmatpush.msra.mxu0 0.0
  %93 = vmatpush.msra.mxu0 0.0
  %94 = vmatpush.msra.mxu0 0.0
  %95 = vmatpush.msra.mxu0 0.0
  %96 = vmatpush.msra.mxu0 0.0
  %97 = vmatpush.msra.mxu0 0.0
  %98 = vmatpush.msra.mxu0 %v36
  %99 = vmatpush.msra.mxu0 %v35
  %100 = vmatpush.msra.mxu0 %v34
  %101 = vmatpush.msra.mxu0 %v33
  %102 = vmatmul.f32.gmra.mxu0 %v39
  %v103 = vpop.f32.mrf.mxu0
  %v104 = vadd.f32 0.0, %v103
  %105 = vmatmul.f32.gmra.mxu0 %v42
  %v106 = vpop.f32.mrf.mxu0
  %v107 = vadd.f32 0.0, %v106
  %108 = vmatmul.f32.gmra.mxu0 %v45
  %v109 = vpop.f32.mrf.mxu0
  %v110 = vadd.f32 0.0, %v109
  %111 = vmatmul.f32.gmra.mxu0 %v48
  %v112 = vpop.f32.mrf.mxu0
  %v113 = vadd.f32 0.0, %v112
  %114 = vmatmul.f32.gmra.mxu0 %v51
  %v115 = vpop.f32.mrf.mxu0
  %v116 = vadd.f32 0.0, %v115
  %117 = vmatmul.f32.gmra.mxu0 %v54
  %v118 = vpop.f32.mrf.mxu0
  %v119 = vadd.f32 0.0, %v118
  %120 = vmatmul.f32.gmra.mxu0 %v57
  %v121 = vpop.f32.mrf.mxu0
  %v122 = vadd.f32 0.0, %v121
  %123 = vmatmul.f32.gmra.mxu0 %v60
  %v124 = vpop.f32.mrf.mxu0
  %v125 = vadd.f32 0.0, %v124
  %126 = vmatmul.f32.gmra.mxu0 %v63
  %v127 = vpop.f32.mrf.mxu0
  %v128 = vadd.f32 0.0, %v127
  %129 = vmatmul.f32.gmra.mxu0 %v66
  %v130 = vpop.f32.mrf.mxu0
  %v131 = vadd.f32 0.0, %v130
  %132 = vmatmul.f32.gmra.mxu0 %v69
  %v133 = vpop.f32.mrf.mxu0
  %v134 = vadd.f32 0.0, %v133
  %135 = vmatmul.f32.gmra.mxu0 %v72
  %v136 = vpop.f32.mrf.mxu0
  %v137 = vadd.f32 0.0, %v136
  %138 = vmatmul.f32.gmra.mxu0 %v75
  %v139 = vpop.f32.mrf.mxu0
  %v140 = vadd.f32 0.0, %v139
  %141 = vmatmul.f32.gmra.mxu0 %v78
  %v142 = vpop.f32.mrf.mxu0
  %v143 = vadd.f32 0.0, %v142
  %144 = vmatmul.f32.gmra.mxu0 %v81
  %v145 = vpop.f32.mrf.mxu0
  %v146 = vadd.f32 0.0, %v145
  %147 = vmatmul.f32.gmra.mxu0 %v84
  %v148 = vpop.f32.mrf.mxu0
  %v149 = vadd.f32 0.0, %v148
  %150 = vdwg.mxu0
  %v151 = vmax.f32 %v104, 0.0
  %v152 = vmax.f32 %v107, 0.0
  %v153 = vmax.f32 %v110, 0.0
  %v154 = vmax.f32 %v113, 0.0
  %v155 = vmax.f32 %v116, 0.0
  %v156 = vmax.f32 %v119, 0.0
  %v157 = vmax.f32 %v122, 0.0
  %v158 = vmax.f32 %v125, 0.0
  %v159 = vmax.f32 %v128, 0.0
  %v160 = vmax.f32 %v131, 0.0
  %v161 = vmax.f32 %v134, 0.0
  %v162 = vmax.f32 %v137, 0.0
  %v163 = vmax.f32 %v140, 0.0
  %v164 = vmax.f32 %v143, 0.0
  %v165 = vmax.f32 %v146, 0.0
  %v166 = vmax.f32 %v149, 0.0
  %v167 = vld [vmem:[%s2] sm:$0xff]
  %v168 = vld [vmem:[%s3] sm:$0xff]
  %170 = vset.pattern.permute.xlu0 0
  %171 = vperm.xlu0 %170, %v168
  %v172 = vpop.permute.xlu0 %171
  %174 = vmatpush.msra.mxu0 %v166
  %175 = vmatpush.msra.mxu0 %v165
  %176 = vmatpush.msra.mxu0 %v164
  %177 = vmatpush.msra.mxu0 %v163
  %178 = vmatpush.msra.mxu0 %v162
  %179 = vmatpush.msra.mxu0 %v161
  %180 = vmatpush.msra.mxu0 %v160
  %181 = vmatpush.msra.mxu0 %v159
  %182 = vmatpush.msra.mxu0 %v158
  %183 = vmatpush.msra.mxu0 %v157
  %184 = vmatpush.msra.mxu0 %v156
  %185 = vmatpush.msra.mxu0 %v155
  %186 = vmatpush.msra.mxu0 %v154
  %187 = vmatpush.msra.mxu0 %v153
  %188 = vmatpush.msra.mxu0 %v152
  %189 = vmatpush.msra.mxu0 %v151
  %190 = vmatmul.f32.gmra.mxu0 %v167
  %v191 = vpop.f32.mrf.mxu0
  %v192 = vadd.f32 %v172, %v191
  %193 = vdwg.mxu0
  %v194 = vxor.u32 %v192, 2147483648
  %v195 = vmul.f32 %v194, 1.442695
  %v196 = vpow.pop %v195
  %v197 = vadd.f32 %v196, 1.0
  %v198 = vrcp.pop %v197
  %v199 = vmul.f32 %v197, %v198
  %v200 = vsub.f32 1.0, %v199
  %v201 = vmul.f32 %v198, %v200
  %v202 = vadd.f32 %v198, %v201
  %vm203 = vweird.f32 %v197
  %vm204 = vweird.f32 %v198
  %vm205 = vmor %vm203, %vm204
  %v206 = vsel %vm205, %v198, %v202
  %v207 = vand.u32 2147483647, %v197
  %vm208 = vcmp.eq.f32.partialorder %v207, 8.507059e+37
  %v209 = vand.u32 %v197, 2147483648
  %v210 = vor.u32 1.1754944e-38, %v209
  %v211 = vsel %vm208, %v210, %v206
  %v212 = vmul.f32 1.0, %v211
  %213 = vst [vmem:[%s4] sm:$0xff] %v212
  // Predicated region
  $region18: #{esmm_forward.1} parent=0 // pred_check
    _
  $region19: #{esmm_forward.1} parent=0 // pred_check_branch
    %215 = sbr.rel (0) target = $region21
  $region20: #{esmm_forward.1} parent=0 // pred_region
    _
  $region21: #{esmm_forward.1} parent=0 // pred_fallthru
    _
  // Predicated region
  $region22: #{esmm_forward.1} parent=0 // pred_check
    _
  $region23: #{esmm_forward.1} parent=0 // pred_check_branch
    %217 = sbr.rel (0) target = $region25
  $region24: #{esmm_forward.1} parent=0 // pred_region
    _
  $region25: #{esmm_forward.1} parent=0 // pred_fallthru
    _

</llo_original>
